<compile_context>
chip_gen: v7x
topology: tpu7x:2x2x1
jax: 0.10.0
libtpu: 0.0.40
codegen_flags: <defaults>
</compile_context>

<pallas_src>
import functools

import jax
import jax.numpy as jnp
import numpy as np
from jax.experimental import pallas as pl
from jax.experimental.pallas import tpu as pltpu


# ----------------------------------------------------------------------------
# Pallas kernel: full QMIX forward for one batch tile (weights resident).
# ----------------------------------------------------------------------------
def qmix_kernel(
    sflat_ref,   # (TB, NA*ID)              flattened joint state tile
    w0_ref,      # (NA*ID, NA*H1)           block-diag per-agent layer 0
    b0_ref,      # (1, NA*H1)
    w1_ref,      # (NA*H1, NA*H2)           block-diag per-agent layer 1
    b1_ref,      # (1, NA*H2)
    w2_ref,      # (NA*H2, NA*OUT)          block-diag per-agent layer 2
    b2_ref,      # (1, NA*OUT)
    ha_w_ref,    # (NA*ID, 4*MH)            [hyper_w_1 L1 | hyper_w_2 L1 | hyper_b_2 L1 | hyper_b_1]
    ha_b_ref,    # (1, 4*MH)
    hb_w_ref,    # (4*MH, NA*MH + MH + 1)   block-diag second layers (last MH rows zero)
    hb_b_ref,    # (1, NA*MH + MH + 1)
    out_ref,     # (TB, 1)
    *,
    num_agents,
    out_dims,
    mixer_hidden,
):
    NA, OUT, MH = num_agents, out_dims, mixer_hidden
    f32 = jnp.float32

    def relu(x):
        return jnp.maximum(x, 0.0)

    def elu(z):
        # Cancellation-free ELU: expm1(z) = 2*tanh(z/2) / (1 - tanh(z/2)),
        # stable for z <= 0 (denominator in [1, 2)).  Uses only tanh + divide,
        # both guaranteed Mosaic/EUP lowerings; avoids exp(z)-1 loss near 0-.
        t = jnp.tanh(0.5 * z)
        return jnp.where(z > 0.0, z, 2.0 * t / (1.0 - t))

    s = sflat_ref[...]                                                 # (TB, NA*ID)

    # ---- per-agent Q network: 3 block-diagonal matmuls -------------------
    h = relu(jnp.dot(s, w0_ref[...], preferred_element_type=f32) + b0_ref[...])
    h = relu(jnp.dot(h, w1_ref[...], preferred_element_type=f32) + b1_ref[...])
    q = jnp.dot(h, w2_ref[...], preferred_element_type=f32) + b2_ref[...]   # (TB, NA*OUT)

    # ---- fused hypernet first layers: one N=4*MH matmul -------------------
    hcat = jnp.dot(s, ha_w_ref[...], preferred_element_type=f32) + ha_b_ref[...]  # (TB, 4*MH)
    b1m = hcat[:, 3 * MH:4 * MH]        # hyper_b_1 output (no ReLU in the module)
    hrelu = relu(hcat)

    # ---- fused hypernet second layers: one block-diag matmul --------------
    # rows 3*MH:4*MH of hb_w are zero, so relu(hyper_b_1 pre-act) contributes
    # exactly nothing -> identical math to the separate second layers.
    hout = jnp.dot(hrelu, hb_w_ref[...], preferred_element_type=f32) + hb_b_ref[...]
    w1_full = jnp.abs(hout[:, 0:NA * MH])                     # (TB, NA*MH)  |hyper_w_1(s)|
    w2 = jnp.abs(hout[:, NA * MH:NA * MH + MH])               # (TB, MH)     |hyper_w_2(s)|
    b2v = hout[:, NA * MH + MH:NA * MH + MH + 1]              # (TB, 1)      hyper_b_2(s)

    # ---- mixing: hidden_pre[b,:] = sum_a max_act(q_a[b]) * w1_a[b,:] ------
    # TODO(synk): for large NA switch this static unroll to lax.fori_loop over
    #             a stacked ref to bound vreg live ranges.
    def agent_term(a):
        v_a = jnp.max(q[:, a * OUT:(a + 1) * OUT], axis=-1, keepdims=True)   # (TB, 1)
        return v_a * w1_full[:, a * MH:(a + 1) * MH]

    hidden_pre = agent_term(0)
    for a in range(1, NA):
        hidden_pre = hidden_pre + agent_term(a)

    hidden = elu(hidden_pre + b1m)                                     # (TB, MH)
    q_total = jnp.sum(hidden * w2, axis=-1, keepdims=True) + b2v       # (TB, 1)

    # (TB, 1) out block: last dim equals the full array dim, so the spec is
    # legal; the 1-lane masked store per tile is a negligible epilogue.
    out_ref[...] = q_total


# ----------------------------------------------------------------------------
# Wrapper: batch grid, resident weights, megacore-parallel batch axis.
# ----------------------------------------------------------------------------
def qmix_forward(states, agent_ids, fused_params, *, batch_tile=512):
    """states: (B, NA, ID) float32 -> q_total (B, 1) float32."""
    del agent_ids  # routing is positional; see TODO at top of file
    B, NA, ID = states.shape
    NAID = NA * ID
    (w0, b0, w1, b1, w2, b2, ha_w, ha_b, hb_w, hb_b) = fused_params
    out_dims = w2.shape[1] // NA
    mixer_hidden = ha_w.shape[1] // 4

    sflat = states.reshape(B, NAID)          # single state stream, DMA'd once

    # Batch tiling: one tile for small B, otherwise multiples of batch_tile.
    if B <= batch_tile:
        TB, Bp = B, B
    else:
        TB = batch_tile                      # multiple of 8 (sublane constraint)
        Bp = TB * int(pl.cdiv(B, TB))
        if Bp != B:
            sflat = jnp.pad(sflat, ((0, Bp - B), (0, 0)))
    grid = (Bp // TB,)

    kernel = functools.partial(
        qmix_kernel, num_agents=NA, out_dims=out_dims, mixer_hidden=mixer_hidden)

    def resident(p):
        # full-extent block + constant index map -> DMA'd once, stays in VMEM
        return pl.BlockSpec(p.shape, lambda i: (0,) * p.ndim)

    grid_spec = pltpu.PrefetchScalarGridSpec(
        num_scalar_prefetch=0,
        grid=grid,
        in_specs=[pl.BlockSpec((TB, NAID), lambda i: (i, 0))]
                 + [resident(p) for p in fused_params],
        out_specs=pl.BlockSpec((TB, 1), lambda i: (i, 0)),
    )

    # VMEM budget: resident weights (Pallas keeps 2 buffers per input spec)
    # plus double-buffered state/out tiles.  Only raise the scoped limit when
    # the default (16/32 MiB depending on chip) would be tight; keep the
    # request well under v7x's 64 MiB physical VMEM.
    resident_bytes = sum(int(np.prod(p.shape)) * 4 for p in fused_params)
    tile_bytes = TB * (NAID + 1) * 4
    vmem_need = 2 * resident_bytes + 2 * tile_bytes
    vmem_limit = None
    if vmem_need > (12 << 20):
        vmem_limit = min(int(2 * vmem_need) + (4 << 20), 48 << 20)

    out = pl.pallas_call(
        kernel,
        out_shape=jax.ShapeDtypeStruct((Bp, 1), jnp.float32),
        grid_spec=grid_spec,
        # Batch tiles are independent -> "parallel" shards grid steps across
        # both TensorCores on v7x (no-op on v5e/v6e).
        compiler_params=pltpu.CompilerParams(
            dimension_semantics=("parallel",),
            vmem_limit_bytes=vmem_limit),
    )(sflat, *fused_params)
    return out[:B]


# ----------------------------------------------------------------------------
# Deterministic parameter construction (synthetic; shapes follow __init__)
# ----------------------------------------------------------------------------
def init_params(key, *, num_agents, input_dims, h1, h2, out_dims, mixer_hidden):
    ks = iter(jax.random.split(key, 32))

    def lin(fan_in, shape):
        bound = 1.0 / np.sqrt(fan_in)
        return jax.random.uniform(next(ks), shape, jnp.float32, -bound, bound)

    NA, ID, MH = num_agents, input_dims, mixer_hidden
    params = (
        # per-agent Q network
        lin(ID, (NA, ID, h1)), lin(ID, (NA, 1, h1)),
        lin(h1, (NA, h1, h2)), lin(h1, (NA, 1, h2)),
        lin(h2, (NA, h2, out_dims)), lin(h2, (NA, 1, out_dims)),
        # hyper_w_1 : Linear(NA*ID, MH) -> ReLU -> Linear(MH, MH*NA)
        lin(NA * ID, (NA * ID, MH)), lin(NA * ID, (1, MH)),
        lin(MH, (NA, MH, MH)), lin(MH, (NA, 1, MH)),
        # hyper_w_2 : Linear(NA*ID, MH) -> ReLU -> Linear(MH, MH)
        lin(NA * ID, (NA * ID, MH)), lin(NA * ID, (1, MH)),
        lin(MH, (MH, MH)), lin(MH, (1, MH)),
        # hyper_b_1 : Linear(NA*ID, MH)
        lin(NA * ID, (NA * ID, MH)), lin(NA * ID, (1, MH)),
        # hyper_b_2 : Linear(NA*ID, MH) -> ReLU -> Linear(MH, 1)
        lin(NA * ID, (NA * ID, MH)), lin(NA * ID, (1, MH)),
        lin(MH, (MH, 1)), lin(MH, (1, 1)),
    )
    return params


# ----------------------------------------------------------------------------
# Host-side (one-time) fusion of parameters into kernel-friendly slabs.
# ----------------------------------------------------------------------------
def fuse_params(params, *, num_agents, input_dims, h1, h2, out_dims, mixer_hidden):
    (qw0, qb0, qw1, qb1, qw2, qb2,
     hw1a_w, hw1a_b, hw1b_w, hw1b_b,
     hw2a_w, hw2a_b, hw2b_w, hw2b_b,
     hb1_w, hb1_b,
     hb2a_w, hb2a_b, hb2b_w, hb2b_b) = params
    NA, MH, OUT = num_agents, mixer_hidden, out_dims

    def block_diag(blocks):  # (NA, r, c) -> (NA*r, NA*c) block-diagonal
        nb, r, c = blocks.shape
        out = jnp.zeros((nb * r, nb * c), jnp.float32)
        for a in range(nb):
            out = out.at[a * r:(a + 1) * r, a * c:(a + 1) * c].set(blocks[a])
        return out

    # per-agent Q network -> block-diagonal weights, concatenated biases
    w0_bd = block_diag(qw0)                       # (NA*ID, NA*H1)
    b0_c = qb0.reshape(1, NA * h1)
    w1_bd = block_diag(qw1)                       # (NA*H1, NA*H2)
    b1_c = qb1.reshape(1, NA * h2)
    w2_bd = block_diag(qw2)                       # (NA*H2, NA*OUT)
    b2_c = qb2.reshape(1, NA * OUT)

    # fused hypernet first layers: columns = [hw1a | hw2a | hb2a | hb1]
    hypA_w = jnp.concatenate([hw1a_w, hw2a_w, hb2a_w, hb1_w], axis=1)   # (NA*ID, 4*MH)
    hypA_b = jnp.concatenate([hw1a_b, hw2a_b, hb2a_b, hb1_b], axis=1)   # (1, 4*MH)

    # fused hypernet second layers (block-diag over [h1 | h2 | h3 | hb1-pre]);
    # hw1b columns are agent-major, matching PyTorch's view(-1, NA, MH).
    hw1b_cat = jnp.transpose(hw1b_w, (1, 0, 2)).reshape(MH, NA * MH)
    ncols = NA * MH + MH + 1
    hypB_w = jnp.zeros((4 * MH, ncols), jnp.float32)
    hypB_w = hypB_w.at[0:MH, 0:NA * MH].set(hw1b_cat)
    hypB_w = hypB_w.at[MH:2 * MH, NA * MH:NA * MH + MH].set(hw2b_w)
    hypB_w = hypB_w.at[2 * MH:3 * MH, NA * MH + MH:ncols].set(hb2b_w)
    # rows 3*MH:4*MH stay zero (hyper_b_1 pre-act must not feed second layers)
    hypB_b = jnp.concatenate(
        [hw1b_b.reshape(1, NA * MH), hw2b_b, hb2b_b], axis=1)            # (1, ncols)

    return (w0_bd, b0_c, w1_bd, b1_c, w2_bd, b2_c, hypA_w, hypA_b, hypB_w, hypB_b)


# ----------------------------------------------------------------------------
# Pure-JAX reference mirroring the PyTorch forward (bmm / view structure)
# ----------------------------------------------------------------------------
def qmix_reference(states, params):
    (qw0, qb0, qw1, qb1, qw2, qb2,
     hw1a_w, hw1a_b, hw1b_w, hw1b_b,
     hw2a_w, hw2a_b, hw2b_w, hw2b_b,
     hb1_w, hb1_b,
     hb2a_w, hb2a_b, hb2b_w, hb2b_b) = params

    B, NA, ID = states.shape
    MH = hw1a_w.shape[1]

    def relu(x):
        return jnp.maximum(x, 0.0)

    # per-agent Q net
    qs = []
    for a in range(NA):
        x = states[:, a, :]
        h = relu(x @ qw0[a] + qb0[a])
        h = relu(h @ qw1[a] + qb1[a])
        qs.append(h @ qw2[a] + qb2[a])
    qvals = jnp.stack(qs, axis=1)                                   # (B, NA, OUT)

    values = jnp.max(qvals, axis=-1)[..., None]                     # (B, NA, 1)
    values = values.reshape(B, 1, NA)
    sflat = states.reshape(B, NA * ID)

    # reconstruct the un-split Linear(MH, MH*NA) weight (agent-major columns)
    full_w = jnp.transpose(hw1b_w, (1, 0, 2)).reshape(MH, NA * MH)
    full_b = hw1b_b.reshape(NA * MH)

    w1 = jnp.abs(relu(sflat @ hw1a_w + hw1a_b) @ full_w + full_b)
    w1 = w1.reshape(B, NA, MH)
    b1 = (sflat @ hb1_w + hb1_b).reshape(B, 1, MH)
    hidden = jax.nn.elu(jnp.einsum('bin,bnm->bim', values, w1) + b1)  # (B, 1, MH)

    w2 = jnp.abs(relu(sflat @ hw2a_w + hw2a_b) @ hw2b_w + hw2b_b).reshape(B, MH, 1)
    b2 = (relu(sflat @ hb2a_w + hb2a_b) @ hb2b_w + hb2b_b).reshape(B, 1, 1)
    q_total = jnp.einsum('bim,bmo->bio', hidden, w2) + b2
    return q_total.reshape(B, 1)


if __name__ == "__main__":
    # small shapes consistent with the module defaults
    B, NA, ID = 8, 2, 4          # batch, num_agents, input_dims
    H1 = H2 = 32                 # hidden_cells
    OUT = 6                      # out_dims (discrete actions)
    MH = 32                      # mixer_hidden_size

    key = jax.random.PRNGKey(0)
    k_states, k_params = jax.random.split(key)

    states = jax.random.normal(k_states, (B, NA, ID), dtype=jnp.float32)
    agent_ids = jnp.tile(jnp.arange(NA, dtype=jnp.int32)[None, :], (B, 1))

    params = init_params(k_params, num_agents=NA, input_dims=ID,
                         h1=H1, h2=H2, out_dims=OUT, mixer_hidden=MH)
    fused = fuse_params(params, num_agents=NA, input_dims=ID,
                        h1=H1, h2=H2, out_dims=OUT, mixer_hidden=MH)

    q_total = jax.block_until_ready(qmix_forward(states, agent_ids, fused))
    ref = jax.block_until_ready(qmix_reference(states, params))

    assert q_total.shape == (B, 1)
    np.testing.assert_allclose(np.asarray(q_total), np.asarray(ref),
                               rtol=1e-5, atol=1e-5)
    print("KERNEL_OK")
</pallas_src>

<mosaic_0001>
module attributes {stable_mosaic.version = 11 : i64} {
  func.func @qmix_kernel(%arg0: i32, %arg1: memref<8x8xf32, #tpu.memory_space<vmem>>, %arg2: memref<8x64xf32, #tpu.memory_space<vmem>>, %arg3: memref<1x64xf32, #tpu.memory_space<vmem>>, %arg4: memref<64x64xf32, #tpu.memory_space<vmem>>, %arg5: memref<1x64xf32, #tpu.memory_space<vmem>>, %arg6: memref<64x12xf32, #tpu.memory_space<vmem>>, %arg7: memref<1x12xf32, #tpu.memory_space<vmem>>, %arg8: memref<8x128xf32, #tpu.memory_space<vmem>>, %arg9: memref<1x128xf32, #tpu.memory_space<vmem>>, %arg10: memref<128x97xf32, #tpu.memory_space<vmem>>, %arg11: memref<1x97xf32, #tpu.memory_space<vmem>>, %arg12: memref<8x1xf32, #tpu.memory_space<vmem>>) attributes {dimension_semantics = [#tpu.dimension_semantics<parallel>], iteration_bounds = array<i64: 1>, scalar_prefetch = 0 : i64, scratch_operands = 0 : i64, tpu.core_type = #tpu.core_type<tc>, window_params = [{transform_indices = @transform_0, window_bounds = array<i64: 8, 8>}, {pipeline_mode = #tpu.pipeline_mode<synchronous>, transform_indices = @transform_1, window_bounds = array<i64: 8, 64>}, {pipeline_mode = #tpu.pipeline_mode<synchronous>, transform_indices = @transform_2, window_bounds = array<i64: 1, 64>}, {pipeline_mode = #tpu.pipeline_mode<synchronous>, transform_indices = @transform_3, window_bounds = array<i64: 64, 64>}, {pipeline_mode = #tpu.pipeline_mode<synchronous>, transform_indices = @transform_4, window_bounds = array<i64: 1, 64>}, {pipeline_mode = #tpu.pipeline_mode<synchronous>, transform_indices = @transform_5, window_bounds = array<i64: 64, 12>}, {pipeline_mode = #tpu.pipeline_mode<synchronous>, transform_indices = @transform_6, window_bounds = array<i64: 1, 12>}, {pipeline_mode = #tpu.pipeline_mode<synchronous>, transform_indices = @transform_7, window_bounds = array<i64: 8, 128>}, {pipeline_mode = #tpu.pipeline_mode<synchronous>, transform_indices = @transform_8, window_bounds = array<i64: 1, 128>}, {pipeline_mode = #tpu.pipeline_mode<synchronous>, transform_indices = @transform_9, window_bounds = array<i64: 128, 97>}, {pipeline_mode = #tpu.pipeline_mode<synchronous>, transform_indices = @transform_10, window_bounds = array<i64: 1, 97>}, {transform_indices = @transform_11, window_bounds = array<i64: 8, 1>}]} {
    %c0 = arith.constant 0 : index
    %c0_0 = arith.constant 0 : index
    %0 = vector.load %arg1[%c0, %c0_0] : memref<8x8xf32, #tpu.memory_space<vmem>>, vector<8x8xf32>
    %c0_1 = arith.constant 0 : index
    %c0_2 = arith.constant 0 : index
    %1 = vector.load %arg2[%c0_1, %c0_2] : memref<8x64xf32, #tpu.memory_space<vmem>>, vector<8x64xf32>
    %cst = arith.constant dense<0.000000e+00> : vector<8x64xf32>
    %2 = tpu.matmul %0, %1, %cst {dimension_numbers = #tpu.dot_dimension_numbers<[1], [0], [0], [1], [0, 0, 1, 1], [], []>} : vector<8x8xf32>, vector<8x64xf32>, vector<8x64xf32> -> vector<8x64xf32>
    %c0_3 = arith.constant 0 : index
    %c0_4 = arith.constant 0 : index
    %3 = vector.load %arg3[%c0_3, %c0_4] : memref<1x64xf32, #tpu.memory_space<vmem>>, vector<1x64xf32>
    %4 = vector.broadcast %3 : vector<1x64xf32> to vector<8x64xf32>
    %5 = arith.addf %2, %4 : vector<8x64xf32>
    %cst_5 = arith.constant 0.000000e+00 : f32
    %6 = vector.broadcast %cst_5 : f32 to vector<8x64xf32>
    %7 = arith.maximumf %5, %6 : vector<8x64xf32>
    %c0_6 = arith.constant 0 : index
    %c0_7 = arith.constant 0 : index
    %8 = vector.load %arg4[%c0_6, %c0_7] : memref<64x64xf32, #tpu.memory_space<vmem>>, vector<64x64xf32>
    %cst_8 = arith.constant dense<0.000000e+00> : vector<8x64xf32>
    %9 = tpu.matmul %7, %8, %cst_8 {dimension_numbers = #tpu.dot_dimension_numbers<[1], [0], [0], [1], [0, 0, 1, 1], [], []>} : vector<8x64xf32>, vector<64x64xf32>, vector<8x64xf32> -> vector<8x64xf32>
    %c0_9 = arith.constant 0 : index
    %c0_10 = arith.constant 0 : index
    %10 = vector.load %arg5[%c0_9, %c0_10] : memref<1x64xf32, #tpu.memory_space<vmem>>, vector<1x64xf32>
    %11 = vector.broadcast %10 : vector<1x64xf32> to vector<8x64xf32>
    %12 = arith.addf %9, %11 : vector<8x64xf32>
    %cst_11 = arith.constant 0.000000e+00 : f32
    %13 = vector.broadcast %cst_11 : f32 to vector<8x64xf32>
    %14 = arith.maximumf %12, %13 : vector<8x64xf32>
    %c0_12 = arith.constant 0 : index
    %c0_13 = arith.constant 0 : index
    %15 = vector.load %arg6[%c0_12, %c0_13] : memref<64x12xf32, #tpu.memory_space<vmem>>, vector<64x12xf32>
    %cst_14 = arith.constant dense<0.000000e+00> : vector<8x12xf32>
    %16 = tpu.matmul %14, %15, %cst_14 {dimension_numbers = #tpu.dot_dimension_numbers<[1], [0], [0], [1], [0, 0, 1, 1], [], []>} : vector<8x64xf32>, vector<64x12xf32>, vector<8x12xf32> -> vector<8x12xf32>
    %c0_15 = arith.constant 0 : index
    %c0_16 = arith.constant 0 : index
    %17 = vector.load %arg7[%c0_15, %c0_16] : memref<1x12xf32, #tpu.memory_space<vmem>>, vector<1x12xf32>
    %18 = vector.broadcast %17 : vector<1x12xf32> to vector<8x12xf32>
    %19 = arith.addf %16, %18 : vector<8x12xf32>
    %c0_17 = arith.constant 0 : index
    %c0_18 = arith.constant 0 : index
    %20 = vector.load %arg8[%c0_17, %c0_18] : memref<8x128xf32, #tpu.memory_space<vmem>>, vector<8x128xf32>
    %cst_19 = arith.constant dense<0.000000e+00> : vector<8x128xf32>
    %21 = tpu.matmul %0, %20, %cst_19 {dimension_numbers = #tpu.dot_dimension_numbers<[1], [0], [0], [1], [0, 0, 1, 1], [], []>} : vector<8x8xf32>, vector<8x128xf32>, vector<8x128xf32> -> vector<8x128xf32>
    %c0_20 = arith.constant 0 : index
    %c0_21 = arith.constant 0 : index
    %22 = vector.load %arg9[%c0_20, %c0_21] : memref<1x128xf32, #tpu.memory_space<vmem>>, vector<1x128xf32>
    %23 = vector.broadcast %22 : vector<1x128xf32> to vector<8x128xf32>
    %24 = arith.addf %21, %23 : vector<8x128xf32>
    %25 = vector.extract_strided_slice %24 {offsets = [0, 96], sizes = [8, 32], strides = [1, 1]} : vector<8x128xf32> to vector<8x32xf32>
    %cst_22 = arith.constant 0.000000e+00 : f32
    %26 = vector.broadcast %cst_22 : f32 to vector<8x128xf32>
    %27 = arith.maximumf %24, %26 : vector<8x128xf32>
    %c0_23 = arith.constant 0 : index
    %c0_24 = arith.constant 0 : index
    %28 = vector.load %arg10[%c0_23, %c0_24] : memref<128x97xf32, #tpu.memory_space<vmem>>, vector<128x97xf32>
    %cst_25 = arith.constant dense<0.000000e+00> : vector<8x97xf32>
    %29 = tpu.matmul %27, %28, %cst_25 {dimension_numbers = #tpu.dot_dimension_numbers<[1], [0], [0], [1], [0, 0, 1, 1], [], []>} : vector<8x128xf32>, vector<128x97xf32>, vector<8x97xf32> -> vector<8x97xf32>
    %c0_26 = arith.constant 0 : index
    %c0_27 = arith.constant 0 : index
    %30 = vector.load %arg11[%c0_26, %c0_27] : memref<1x97xf32, #tpu.memory_space<vmem>>, vector<1x97xf32>
    %31 = vector.broadcast %30 : vector<1x97xf32> to vector<8x97xf32>
    %32 = arith.addf %29, %31 : vector<8x97xf32>
    %33 = vector.extract_strided_slice %32 {offsets = [0, 0], sizes = [8, 64], strides = [1, 1]} : vector<8x97xf32> to vector<8x64xf32>
    %34 = math.absf %33 : vector<8x64xf32>
    %35 = vector.extract_strided_slice %32 {offsets = [0, 64], sizes = [8, 32], strides = [1, 1]} : vector<8x97xf32> to vector<8x32xf32>
    %36 = math.absf %35 : vector<8x32xf32>
    %37 = vector.extract_strided_slice %32 {offsets = [0, 96], sizes = [8, 1], strides = [1, 1]} : vector<8x97xf32> to vector<8x1xf32>
    %38 = vector.extract_strided_slice %19 {offsets = [0, 0], sizes = [8, 6], strides = [1, 1]} : vector<8x12xf32> to vector<8x6xf32>
    %cst_28 = arith.constant dense<0xFF800000> : vector<8xf32>
    %39 = vector.multi_reduction <maximumf>, %38, %cst_28 [1] : vector<8x6xf32> to vector<8xf32>
    %40 = vector.shape_cast %39 : vector<8xf32> to vector<8x1xf32>
    %41 = vector.extract_strided_slice %34 {offsets = [0, 0], sizes = [8, 32], strides = [1, 1]} : vector<8x64xf32> to vector<8x32xf32>
    %42 = vector.broadcast %40 : vector<8x1xf32> to vector<8x32xf32>
    %43 = arith.mulf %42, %41 : vector<8x32xf32>
    %44 = vector.extract_strided_slice %19 {offsets = [0, 6], sizes = [8, 6], strides = [1, 1]} : vector<8x12xf32> to vector<8x6xf32>
    %cst_29 = arith.constant dense<0xFF800000> : vector<8xf32>
    %45 = vector.multi_reduction <maximumf>, %44, %cst_29 [1] : vector<8x6xf32> to vector<8xf32>
    %46 = vector.shape_cast %45 : vector<8xf32> to vector<8x1xf32>
    %47 = vector.extract_strided_slice %34 {offsets = [0, 32], sizes = [8, 32], strides = [1, 1]} : vector<8x64xf32> to vector<8x32xf32>
    %48 = vector.broadcast %46 : vector<8x1xf32> to vector<8x32xf32>
    %49 = arith.mulf %48, %47 : vector<8x32xf32>
    %50 = arith.addf %43, %49 : vector<8x32xf32>
    %51 = arith.addf %50, %25 : vector<8x32xf32>
    %cst_30 = arith.constant 5.000000e-01 : f32
    %52 = vector.broadcast %cst_30 : f32 to vector<8x32xf32>
    %53 = arith.mulf %52, %51 : vector<8x32xf32>
    %54 = math.tanh %53 : vector<8x32xf32>
    %cst_31 = arith.constant 0.000000e+00 : f32
    %55 = vector.broadcast %cst_31 : f32 to vector<8x32xf32>
    %56 = arith.cmpf ogt, %51, %55 : vector<8x32xf32>
    %cst_32 = arith.constant 2.000000e+00 : f32
    %57 = vector.broadcast %cst_32 : f32 to vector<8x32xf32>
    %58 = arith.mulf %57, %54 : vector<8x32xf32>
    %cst_33 = arith.constant 1.000000e+00 : f32
    %59 = vector.broadcast %cst_33 : f32 to vector<8x32xf32>
    %60 = arith.subf %59, %54 : vector<8x32xf32>
    %61 = arith.divf %58, %60 : vector<8x32xf32>
    %62 = arith.select %56, %51, %61 : vector<8x32xi1>, vector<8x32xf32>
    %63 = arith.mulf %62, %36 : vector<8x32xf32>
    %cst_34 = arith.constant dense<0.000000e+00> : vector<8xf32>
    %64 = vector.multi_reduction <add>, %63, %cst_34 [1] : vector<8x32xf32> to vector<8xf32>
    %65 = vector.shape_cast %64 : vector<8xf32> to vector<8x1xf32>
    %66 = arith.addf %65, %37 : vector<8x1xf32>
    %c0_35 = arith.constant 0 : index
    %c0_36 = arith.constant 0 : index
    %67 = vector.load %arg12[%c0_35, %c0_36] : memref<8x1xf32, #tpu.memory_space<vmem>>, vector<8x1xf32>
    tpu.vector_store %arg12[%c0_35, %c0_36], %66 {strides = array<i32>} : memref<8x1xf32, #tpu.memory_space<vmem>>, vector<8x1xf32>,
    return
  }
  func.func @transform_0(%arg0: i32) -> (i32, i32) {
    %c0_i32 = arith.constant 0 : i32
    %c0_i32_0 = arith.constant 0 : i32
    return %arg0, %c0_i32 : i32, i32
  }
  func.func @transform_1(%arg0: i32) -> (i32, i32) {
    %c0_i32 = arith.constant 0 : i32
    %c0_i32_0 = arith.constant 0 : i32
    %c0_i32_1 = arith.constant 0 : i32
    return %c0_i32, %c0_i32_0 : i32, i32
  }
  func.func @transform_2(%arg0: i32) -> (i32, i32) {
    %c0_i32 = arith.constant 0 : i32
    %c0_i32_0 = arith.constant 0 : i32
    %c0_i32_1 = arith.constant 0 : i32
    return %c0_i32, %c0_i32_0 : i32, i32
  }
  func.func @transform_3(%arg0: i32) -> (i32, i32) {
    %c0_i32 = arith.constant 0 : i32
    %c0_i32_0 = arith.constant 0 : i32
    %c0_i32_1 = arith.constant 0 : i32
    return %c0_i32, %c0_i32_0 : i32, i32
  }
  func.func @transform_4(%arg0: i32) -> (i32, i32) {
    %c0_i32 = arith.constant 0 : i32
    %c0_i32_0 = arith.constant 0 : i32
    %c0_i32_1 = arith.constant 0 : i32
    return %c0_i32, %c0_i32_0 : i32, i32
  }
  func.func @transform_5(%arg0: i32) -> (i32, i32) {
    %c0_i32 = arith.constant 0 : i32
    %c0_i32_0 = arith.constant 0 : i32
    %c0_i32_1 = arith.constant 0 : i32
    return %c0_i32, %c0_i32_0 : i32, i32
  }
  func.func @transform_6(%arg0: i32) -> (i32, i32) {
    %c0_i32 = arith.constant 0 : i32
    %c0_i32_0 = arith.constant 0 : i32
    %c0_i32_1 = arith.constant 0 : i32
    return %c0_i32, %c0_i32_0 : i32, i32
  }
  func.func @transform_7(%arg0: i32) -> (i32, i32) {
    %c0_i32 = arith.constant 0 : i32
    %c0_i32_0 = arith.constant 0 : i32
    %c0_i32_1 = arith.constant 0 : i32
    return %c0_i32, %c0_i32_0 : i32, i32
  }
  func.func @transform_8(%arg0: i32) -> (i32, i32) {
    %c0_i32 = arith.constant 0 : i32
    %c0_i32_0 = arith.constant 0 : i32
    %c0_i32_1 = arith.constant 0 : i32
    return %c0_i32, %c0_i32_0 : i32, i32
  }
  func.func @transform_9(%arg0: i32) -> (i32, i32) {
    %c0_i32 = arith.constant 0 : i32
    %c0_i32_0 = arith.constant 0 : i32
    %c0_i32_1 = arith.constant 0 : i32
    return %c0_i32, %c0_i32_0 : i32, i32
  }
  func.func @transform_10(%arg0: i32) -> (i32, i32) {
    %c0_i32 = arith.constant 0 : i32
    %c0_i32_0 = arith.constant 0 : i32
    %c0_i32_1 = arith.constant 0 : i32
    return %c0_i32, %c0_i32_0 : i32, i32
  }
  func.func @transform_11(%arg0: i32) -> (i32, i32) {
    %c0_i32 = arith.constant 0 : i32
    %c0_i32_0 = arith.constant 0 : i32
    return %arg0, %c0_i32 : i32, i32
  }
}

</mosaic_0001>

<llo_original>
// kernel: tpu_custom_call.1
$region0: #{tpu_custom_call.1}
  #allocation0 [shape = 'u32[]', space=smem, size = 0x4, offset = 0x4, fixed_abs, tag = 'smem constant byte address 0x4 - core index']
  #allocation1 [shape = 'u32[144,128]{1,0:T(1,128)}', space=vmem, size = 0x12000, scoped, tag = 'internal scratch']
  %s0 = inlined_call_operand.vmem [shape: f32[8,8], index: 0, kind: input, shape index: {}]
  %s1 = inlined_call_operand.vmem [shape: f32[8,64], index: 1, kind: input, shape index: {}]
  %s2 = inlined_call_operand.vmem [shape: f32[1,64], index: 2, kind: input, shape index: {}]
  %s3 = inlined_call_operand.vmem [shape: f32[64,64], index: 3, kind: input, shape index: {}]
  %s4 = inlined_call_operand.vmem [shape: f32[1,64], index: 4, kind: input, shape index: {}]
  %s5 = inlined_call_operand.vmem [shape: f32[64,12], index: 5, kind: input, shape index: {}]
  %s6 = inlined_call_operand.vmem [shape: f32[1,12], index: 6, kind: input, shape index: {}]
  %s7 = inlined_call_operand.vmem [shape: f32[8,128], index: 7, kind: input, shape index: {}]
  %s8 = inlined_call_operand.vmem [shape: f32[1,128], index: 8, kind: input, shape index: {}]
  %s9 = inlined_call_operand.vmem [shape: f32[128,97], index: 9, kind: input, shape index: {}]
  %s10 = inlined_call_operand.vmem [shape: f32[1,97], index: 10, kind: input, shape index: {}]
  %s11 = inlined_call_operand.vmem [shape: f32[8,1], index: 11, kind: output, shape index: {}]
  %s12 = sld [smem:[#allocation0]]
  $region54: #{tpu_custom_call.1} parent=0
    _
  %s14 = ssub.s32 1, %s12
  %s15 = scalar_select 0, %s14, %s12
  // Predicated region
  $region2: #{tpu_custom_call.1} parent=0 // pred_check
    _
  $region3: #{tpu_custom_call.1} parent=0 // pred_check_branch
    %17 = sbr.rel (0) target = $region5
  $region4: #{tpu_custom_call.1} parent=0 // pred_region
    _
  $region5: #{tpu_custom_call.1} parent=0 // pred_fallthru
    _
  // Predicated region
  $region6: #{tpu_custom_call.1} parent=0 // pred_check
    _
  $region7: #{tpu_custom_call.1} parent=0 // pred_check_branch
    %19 = sbr.rel (0) target = $region9
  $region8: #{tpu_custom_call.1} parent=0 // pred_region
    _
  $region9: #{tpu_custom_call.1} parent=0 // pred_fallthru
    _
  // Predicated region
  $region10: #{tpu_custom_call.1} parent=0 // pred_check
    _
  $region11: #{tpu_custom_call.1} parent=0 // pred_check_branch
    %21 = sbr.rel (0) target = $region13
  $region12: #{tpu_custom_call.1} parent=0 // pred_region
    _
  $region13: #{tpu_custom_call.1} parent=0 // pred_fallthru
    _
  // Predicated region
  $region14: #{tpu_custom_call.1} parent=0 // pred_check
    _
  $region15: #{tpu_custom_call.1} parent=0 // pred_check_branch
    %23 = sbr.rel (0) target = $region17
  $region16: #{tpu_custom_call.1} parent=0 // pred_region
    _
  $region17: #{tpu_custom_call.1} parent=0 // pred_fallthru
    _
  // Predicated region
  $region18: #{tpu_custom_call.1} parent=0 // pred_check
    _
  $region19: #{tpu_custom_call.1} parent=0 // pred_check_branch
    %25 = sbr.rel (0) target = $region21
  $region20: #{tpu_custom_call.1} parent=0 // pred_region
    _
  $region21: #{tpu_custom_call.1} parent=0 // pred_fallthru
    _
  // Predicated region
  $region22: #{tpu_custom_call.1} parent=0 // pred_check
    _
  $region23: #{tpu_custom_call.1} parent=0 // pred_check_branch
    %27 = sbr.rel (0) target = $region25
  $region24: #{tpu_custom_call.1} parent=0 // pred_region
    _
  $region25: #{tpu_custom_call.1} parent=0 // pred_fallthru
    _
  // Predicated region
  $region26: #{tpu_custom_call.1} parent=0 // pred_check
    _
  $region27: #{tpu_custom_call.1} parent=0 // pred_check_branch
    %29 = sbr.rel (0) target = $region29
  $region28: #{tpu_custom_call.1} parent=0 // pred_region
    _
  $region29: #{tpu_custom_call.1} parent=0 // pred_fallthru
    _
  // Predicated region
  $region30: #{tpu_custom_call.1} parent=0 // pred_check
    _
  $region31: #{tpu_custom_call.1} parent=0 // pred_check_branch
    %31 = sbr.rel (0) target = $region33
  $region32: #{tpu_custom_call.1} parent=0 // pred_region
    _
  $region33: #{tpu_custom_call.1} parent=0 // pred_fallthru
    _
  // Predicated region
  $region34: #{tpu_custom_call.1} parent=0 // pred_check
    _
  $region35: #{tpu_custom_call.1} parent=0 // pred_check_branch
    %33 = sbr.rel (0) target = $region37
  $region36: #{tpu_custom_call.1} parent=0 // pred_region
    _
  $region37: #{tpu_custom_call.1} parent=0 // pred_fallthru
    _
  // Predicated region
  $region38: #{tpu_custom_call.1} parent=0 // pred_check
    _
  $region39: #{tpu_custom_call.1} parent=0 // pred_check_branch
    %35 = sbr.rel (0) target = $region41
  $region40: #{tpu_custom_call.1} parent=0 // pred_region
    _
  $region41: #{tpu_custom_call.1} parent=0 // pred_fallthru
    _
  // Predicated region
  $region42: #{tpu_custom_call.1} parent=0 // pred_check
    _
  $region43: #{tpu_custom_call.1} parent=0 // pred_check_branch
    %37 = sbr.rel (0) target = $region45
  $region44: #{tpu_custom_call.1} parent=0 // pred_region
    _
  $region45: #{tpu_custom_call.1} parent=0 // pred_fallthru
    _
  %v38 = vld [vmem:[%s0] sm:$0xff]
  %v39 = vld [vmem:[%s1] sm:$0xff]
  %v40 = vld [vmem:[%s2] sm:$0x1]
  %v42 = vlaneseq
  %v43 = vshrl.u32 %v42, 7
  %v44 = vsub.s32 0, %v43
  %v45 = vrot.slane %v40, %v44
  %vm47 = vcmask 64512
  %v49 = vsel %vm47, %v38, 0
  %51 = vmatprep.subr.mxu0 0.0
  %52 = vmatpush1.msra.mxu0 %v39
  %53 = vmatprep.subr.mxu0 0.0
  %54 = vmatpush1.msra.mxu0 0.0
  %55 = vmatprep.subr.mxu0 0.0
  %56 = vmatpush1.msra.mxu0 0.0
  %57 = vmatprep.subr.mxu0 0.0
  %58 = vmatpush1.msra.mxu0 0.0
  %59 = vmatprep.subr.mxu0 0.0
  %60 = vmatpush1.msra.mxu0 0.0
  %61 = vmatprep.subr.mxu0 0.0
  %62 = vmatpush1.msra.mxu0 0.0
  %63 = vmatprep.subr.mxu0 0.0
  %64 = vmatpush1.msra.mxu0 0.0
  %65 = vmatprep.subr.mxu0 0.0
  %66 = vmatpush1.msra.mxu0 0.0
  %67 = vmatprep.subr.mxu0 0.0
  %68 = vmatpush1.msra.mxu0 0.0
  %69 = vmatprep.subr.mxu0 0.0
  %70 = vmatpush1.msra.mxu0 0.0
  %71 = vmatprep.subr.mxu0 0.0
  %72 = vmatpush1.msra.mxu0 0.0
  %73 = vmatprep.subr.mxu0 0.0
  %74 = vmatpush1.msra.mxu0 0.0
  %75 = vmatprep.subr.mxu0 0.0
  %76 = vmatpush1.msra.mxu0 0.0
  %77 = vmatprep.subr.mxu0 0.0
  %78 = vmatpush1.msra.mxu0 0.0
  %79 = vmatprep.subr.mxu0 0.0
  %80 = vmatpush1.msra.mxu0 0.0
  %81 = vmatprep.subr.mxu0 0.0
  %82 = vmatpush1.msra.mxu0 0.0
  %83 = vmatprep.subr.mxu0 0.0
  %84 = vmatpush1.msra.mxu0 0.0
  %85 = vmatprep.subr.mxu0 0.0
  %86 = vmatpush1.msra.mxu0 0.0
  %87 = vmatprep.subr.mxu0 0.0
  %88 = vmatpush1.msra.mxu0 0.0
  %89 = vmatprep.subr.mxu0 0.0
  %90 = vmatpush1.msra.mxu0 0.0
  %91 = vmatprep.subr.mxu0 0.0
  %92 = vmatpush1.msra.mxu0 0.0
  %93 = vmatprep.subr.mxu0 0.0
  %94 = vmatpush1.msra.mxu0 0.0
  %95 = vmatprep.subr.mxu0 0.0
  %96 = vmatpush1.msra.mxu0 0.0
  %97 = vmatprep.subr.mxu0 0.0
  %98 = vmatpush1.msra.mxu0 0.0
  %99 = vmatprep.subr.mxu0 0.0
  %100 = vmatpush1.msra.mxu0 0.0
  %101 = vmatprep.subr.mxu0 0.0
  %102 = vmatpush1.msra.mxu0 0.0
  %103 = vmatprep.subr.mxu0 0.0
  %104 = vmatpush1.msra.mxu0 0.0
  %105 = vmatprep.subr.mxu0 0.0
  %106 = vmatpush1.msra.mxu0 0.0
  %107 = vmatprep.subr.mxu0 0.0
  %108 = vmatpush1.msra.mxu0 0.0
  %109 = vmatprep.subr.mxu0 0.0
  %110 = vmatpush1.msra.mxu0 0.0
  %111 = vmatprep.subr.mxu0 0.0
  %112 = vmatpush1.msra.mxu0 0.0
  %113 = vmatprep.subr.mxu0 0.0
  %114 = vmatpush1.msra.mxu0 0.0
  %115 = vmatprep.mubr.f32.mxu0 0.0
  %116 = vmatmul.mubr.f32.gmra.mrb[0].mxu0 %v49
  %v117 = vpop.f32.mrb[0].mxu0
  %v118 = vadd.f32 %v45, %v117
  %v119 = vpop.f32.mrb[0].mxu0
  %120 = vdwg.mxu0
  %v121 = vmax.f32 %v118, 0.0
  %v122 = vld [vmem:[%s3] sm:$0xff]
  %v123 = vld [vmem:[%s3 + $0x8] sm:$0xff]
  %v124 = vld [vmem:[%s3 + $0x10] sm:$0xff]
  %v125 = vld [vmem:[%s3 + $0x18] sm:$0xff]
  %v126 = vld [vmem:[%s3 + $0x20] sm:$0xff]
  %v127 = vld [vmem:[%s3 + $0x28] sm:$0xff]
  %v128 = vld [vmem:[%s3 + $0x30] sm:$0xff]
  %v129 = vld [vmem:[%s3 + $0x38] sm:$0xff]
  %v130 = vld [vmem:[%s4] sm:$0x1]
  %v132 = vlaneseq
  %v133 = vshrl.u32 %v132, 7
  %v134 = vsub.s32 0, %v133
  %v135 = vrot.slane %v130, %v134
  %vm137 = vcmask 523264
  %v139 = vsel %vm137, %v121, 0
  %141 = vmatprep.subr.mxu0 0.0
  %142 = vmatpush1.msra.mxu0 %v122
  %143 = vmatprep.subr.mxu0 0.0
  %144 = vmatpush1.msra.mxu0 %v123
  %145 = vmatprep.subr.mxu0 0.0
  %146 = vmatpush1.msra.mxu0 %v124
  %147 = vmatprep.subr.mxu0 0.0
  %148 = vmatpush1.msra.mxu0 %v125
  %149 = vmatprep.subr.mxu0 0.0
  %150 = vmatpush1.msra.mxu0 %v126
  %151 = vmatprep.subr.mxu0 0.0
  %152 = vmatpush1.msra.mxu0 %v127
  %153 = vmatprep.subr.mxu0 0.0
  %154 = vmatpush1.msra.mxu0 %v128
  %155 = vmatprep.subr.mxu0 0.0
  %156 = vmatpush1.msra.mxu0 %v129
  %157 = vmatprep.subr.mxu0 0.0
  %158 = vmatpush1.msra.mxu0 0.0
  %159 = vmatprep.subr.mxu0 0.0
  %160 = vmatpush1.msra.mxu0 0.0
  %161 = vmatprep.subr.mxu0 0.0
  %162 = vmatpush1.msra.mxu0 0.0
  %163 = vmatprep.subr.mxu0 0.0
  %164 = vmatpush1.msra.mxu0 0.0
  %165 = vmatprep.subr.mxu0 0.0
  %166 = vmatpush1.msra.mxu0 0.0
  %167 = vmatprep.subr.mxu0 0.0
  %168 = vmatpush1.msra.mxu0 0.0
  %169 = vmatprep.subr.mxu0 0.0
  %170 = vmatpush1.msra.mxu0 0.0
  %171 = vmatprep.subr.mxu0 0.0
  %172 = vmatpush1.msra.mxu0 0.0
  %173 = vmatprep.subr.mxu0 0.0
  %174 = vmatpush1.msra.mxu0 0.0
  %175 = vmatprep.subr.mxu0 0.0
  %176 = vmatpush1.msra.mxu0 0.0
  %177 = vmatprep.subr.mxu0 0.0
  %178 = vmatpush1.msra.mxu0 0.0
  %179 = vmatprep.subr.mxu0 0.0
  %180 = vmatpush1.msra.mxu0 0.0
  %181 = vmatprep.subr.mxu0 0.0
  %182 = vmatpush1.msra.mxu0 0.0
  %183 = vmatprep.subr.mxu0 0.0
  %184 = vmatpush1.msra.mxu0 0.0
  %185 = vmatprep.subr.mxu0 0.0
  %186 = vmatpush1.msra.mxu0 0.0
  %187 = vmatprep.subr.mxu0 0.0
  %188 = vmatpush1.msra.mxu0 0.0
  %189 = vmatprep.subr.mxu0 0.0
  %190 = vmatpush1.msra.mxu0 0.0
  %191 = vmatprep.subr.mxu0 0.0
  %192 = vmatpush1.msra.mxu0 0.0
  %193 = vmatprep.subr.mxu0 0.0
  %194 = vmatpush1.msra.mxu0 0.0
  %195 = vmatprep.subr.mxu0 0.0
  %196 = vmatpush1.msra.mxu0 0.0
  %197 = vmatprep.subr.mxu0 0.0
  %198 = vmatpush1.msra.mxu0 0.0
  %199 = vmatprep.subr.mxu0 0.0
  %200 = vmatpush1.msra.mxu0 0.0
  %201 = vmatprep.subr.mxu0 0.0
  %202 = vmatpush1.msra.mxu0 0.0
  %203 = vmatprep.subr.mxu0 0.0
  %204 = vmatpush1.msra.mxu0 0.0
  %205 = vmatprep.mubr.f32.mxu0 0.0
  %206 = vmatmul.mubr.f32.gmra.mrb[0].mxu0 %v139
  %v207 = vpop.f32.mrb[0].mxu0
  %v208 = vadd.f32 %v135, %v207
  %v209 = vpop.f32.mrb[0].mxu0
  %210 = vdwg.mxu0
  %v211 = vmax.f32 %v208, 0.0
  %v212 = vld [vmem:[%s5] sm:$0xff]
  %v213 = vld [vmem:[%s5 + $0x8] sm:$0xff]
  %v214 = vld [vmem:[%s5 + $0x10] sm:$0xff]
  %v215 = vld [vmem:[%s5 + $0x18] sm:$0xff]
  %v216 = vld [vmem:[%s5 + $0x20] sm:$0xff]
  %v217 = vld [vmem:[%s5 + $0x28] sm:$0xff]
  %v218 = vld [vmem:[%s5 + $0x30] sm:$0xff]
  %v219 = vld [vmem:[%s5 + $0x38] sm:$0xff]
  %v220 = vld [vmem:[%s6] sm:$0x1]
  %v222 = vlaneseq
  %v223 = vshrl.u32 %v222, 7
  %v224 = vsub.s32 0, %v223
  %v225 = vrot.slane %v220, %v224
  %v228 = vsel %vm137, %v211, 0
  %230 = vmatprep.subr.mxu0 0.0
  %231 = vmatpush1.msra.mxu0 %v212
  %232 = vmatprep.subr.mxu0 0.0
  %233 = vmatpush1.msra.mxu0 %v213
  %234 = vmatprep.subr.mxu0 0.0
  %235 = vmatpush1.msra.mxu0 %v214
  %236 = vmatprep.subr.mxu0 0.0
  %237 = vmatpush1.msra.mxu0 %v215
  %238 = vmatprep.subr.mxu0 0.0
  %239 = vmatpush1.msra.mxu0 %v216
  %240 = vmatprep.subr.mxu0 0.0
  %241 = vmatpush1.msra.mxu0 %v217
  %242 = vmatprep.subr.mxu0 0.0
  %243 = vmatpush1.msra.mxu0 %v218
  %244 = vmatprep.subr.mxu0 0.0
  %245 = vmatpush1.msra.mxu0 %v219
  %246 = vmatprep.subr.mxu0 0.0
  %247 = vmatpush1.msra.mxu0 0.0
  %248 = vmatprep.subr.mxu0 0.0
  %249 = vmatpush1.msra.mxu0 0.0
  %250 = vmatprep.subr.mxu0 0.0
  %251 = vmatpush1.msra.mxu0 0.0
  %252 = vmatprep.subr.mxu0 0.0
  %253 = vmatpush1.msra.mxu0 0.0
  %254 = vmatprep.subr.mxu0 0.0
  %255 = vmatpush1.msra.mxu0 0.0
  %256 = vmatprep.subr.mxu0 0.0
  %257 = vmatpush1.msra.mxu0 0.0
  %258 = vmatprep.subr.mxu0 0.0
  %259 = vmatpush1.msra.mxu0 0.0
  %260 = vmatprep.subr.mxu0 0.0
  %261 = vmatpush1.msra.mxu0 0.0
  %262 = vmatprep.subr.mxu0 0.0
  %263 = vmatpush1.msra.mxu0 0.0
  %264 = vmatprep.subr.mxu0 0.0
  %265 = vmatpush1.msra.mxu0 0.0
  %266 = vmatprep.subr.mxu0 0.0
  %267 = vmatpush1.msra.mxu0 0.0
  %268 = vmatprep.subr.mxu0 0.0
  %269 = vmatpush1.msra.mxu0 0.0
  %270 = vmatprep.subr.mxu0 0.0
  %271 = vmatpush1.msra.mxu0 0.0
  %272 = vmatprep.subr.mxu0 0.0
  %273 = vmatpush1.msra.mxu0 0.0
  %274 = vmatprep.subr.mxu0 0.0
  %275 = vmatpush1.msra.mxu0 0.0
  %276 = vmatprep.subr.mxu0 0.0
  %277 = vmatpush1.msra.mxu0 0.0
  %278 = vmatprep.subr.mxu0 0.0
  %279 = vmatpush1.msra.mxu0 0.0
  %280 = vmatprep.subr.mxu0 0.0
  %281 = vmatpush1.msra.mxu0 0.0
  %282 = vmatprep.subr.mxu0 0.0
  %283 = vmatpush1.msra.mxu0 0.0
  %284 = vmatprep.subr.mxu0 0.0
  %285 = vmatpush1.msra.mxu0 0.0
  %286 = vmatprep.subr.mxu0 0.0
  %287 = vmatpush1.msra.mxu0 0.0
  %288 = vmatprep.subr.mxu0 0.0
  %289 = vmatpush1.msra.mxu0 0.0
  %290 = vmatprep.subr.mxu0 0.0
  %291 = vmatpush1.msra.mxu0 0.0
  %292 = vmatprep.subr.mxu0 0.0
  %293 = vmatpush1.msra.mxu0 0.0
  %294 = vmatprep.mubr.f32.mxu0 0.0
  %295 = vmatmul.mubr.f32.gmra.mrb[0].mxu0 %v228
  %v296 = vpop.f32.mrb[0].mxu0
  %v297 = vadd.f32 %v225, %v296
  %v298 = vpop.f32.mrb[0].mxu0
  %299 = vdwg.mxu0
  %v300 = vld [vmem:[%s7] sm:$0xff]
  %v301 = vld [vmem:[%s8] sm:$0x1]
  %v303 = vlaneseq
  %v304 = vshrl.u32 %v303, 7
  %v305 = vsub.s32 0, %v304
  %v306 = vrot.slane %v301, %v305
  %308 = vmatprep.subr.mxu0 0.0
  %309 = vmatpush1.msra.mxu0 %v300
  %310 = vmatprep.subr.mxu0 0.0
  %311 = vmatpush1.msra.mxu0 0.0
  %312 = vmatprep.subr.mxu0 0.0
  %313 = vmatpush1.msra.mxu0 0.0
  %314 = vmatprep.subr.mxu0 0.0
  %315 = vmatpush1.msra.mxu0 0.0
  %316 = vmatprep.subr.mxu0 0.0
  %317 = vmatpush1.msra.mxu0 0.0
  %318 = vmatprep.subr.mxu0 0.0
  %319 = vmatpush1.msra.mxu0 0.0
  %320 = vmatprep.subr.mxu0 0.0
  %321 = vmatpush1.msra.mxu0 0.0
  %322 = vmatprep.subr.mxu0 0.0
  %323 = vmatpush1.msra.mxu0 0.0
  %324 = vmatprep.subr.mxu0 0.0
  %325 = vmatpush1.msra.mxu0 0.0
  %326 = vmatprep.subr.mxu0 0.0
  %327 = vmatpush1.msra.mxu0 0.0
  %328 = vmatprep.subr.mxu0 0.0
  %329 = vmatpush1.msra.mxu0 0.0
  %330 = vmatprep.subr.mxu0 0.0
  %331 = vmatpush1.msra.mxu0 0.0
  %332 = vmatprep.subr.mxu0 0.0
  %333 = vmatpush1.msra.mxu0 0.0
  %334 = vmatprep.subr.mxu0 0.0
  %335 = vmatpush1.msra.mxu0 0.0
  %336 = vmatprep.subr.mxu0 0.0
  %337 = vmatpush1.msra.mxu0 0.0
  %338 = vmatprep.subr.mxu0 0.0
  %339 = vmatpush1.msra.mxu0 0.0
  %340 = vmatprep.subr.mxu0 0.0
  %341 = vmatpush1.msra.mxu0 0.0
  %342 = vmatprep.subr.mxu0 0.0
  %343 = vmatpush1.msra.mxu0 0.0
  %344 = vmatprep.subr.mxu0 0.0
  %345 = vmatpush1.msra.mxu0 0.0
  %346 = vmatprep.subr.mxu0 0.0
  %347 = vmatpush1.msra.mxu0 0.0
  %348 = vmatprep.subr.mxu0 0.0
  %349 = vmatpush1.msra.mxu0 0.0
  %350 = vmatprep.subr.mxu0 0.0
  %351 = vmatpush1.msra.mxu0 0.0
  %352 = vmatprep.subr.mxu0 0.0
  %353 = vmatpush1.msra.mxu0 0.0
  %354 = vmatprep.subr.mxu0 0.0
  %355 = vmatpush1.msra.mxu0 0.0
  %356 = vmatprep.subr.mxu0 0.0
  %357 = vmatpush1.msra.mxu0 0.0
  %358 = vmatprep.subr.mxu0 0.0
  %359 = vmatpush1.msra.mxu0 0.0
  %360 = vmatprep.subr.mxu0 0.0
  %361 = vmatpush1.msra.mxu0 0.0
  %362 = vmatprep.subr.mxu0 0.0
  %363 = vmatpush1.msra.mxu0 0.0
  %364 = vmatprep.subr.mxu0 0.0
  %365 = vmatpush1.msra.mxu0 0.0
  %366 = vmatprep.subr.mxu0 0.0
  %367 = vmatpush1.msra.mxu0 0.0
  %368 = vmatprep.subr.mxu0 0.0
  %369 = vmatpush1.msra.mxu0 0.0
  %370 = vmatprep.subr.mxu0 0.0
  %371 = vmatpush1.msra.mxu0 0.0
  %372 = vmatprep.mubr.f32.mxu0 0.0
  %373 = vmatmul.mubr.f32.gmra.mrb[0].mxu0 %v49
  %v374 = vpop.f32.mrb[0].mxu0
  %v375 = vadd.f32 %v306, %v374
  %v376 = vpop.f32.mrb[0].mxu0
  %377 = vdwg.mxu0
  %v378 = vmax.f32 %v375, 0.0
  %v379 = vld [vmem:[%s9] sm:$0xff]
  %v380 = vld [vmem:[%s9 + $0x8] sm:$0xff]
  %v381 = vld [vmem:[%s9 + $0x10] sm:$0xff]
  %v382 = vld [vmem:[%s9 + $0x18] sm:$0xff]
  %v383 = vld [vmem:[%s9 + $0x20] sm:$0xff]
  %v384 = vld [vmem:[%s9 + $0x28] sm:$0xff]
  %v385 = vld [vmem:[%s9 + $0x30] sm:$0xff]
  %v386 = vld [vmem:[%s9 + $0x38] sm:$0xff]
  %v387 = vld [vmem:[%s9 + $0x40] sm:$0xff]
  %v388 = vld [vmem:[%s9 + $0x48] sm:$0xff]
  %v389 = vld [vmem:[%s9 + $0x50] sm:$0xff]
  %v390 = vld [vmem:[%s9 + $0x58] sm:$0xff]
  %v391 = vld [vmem:[%s9 + $0x60] sm:$0xff]
  %v392 = vld [vmem:[%s9 + $0x68] sm:$0xff]
  %v393 = vld [vmem:[%s9 + $0x70] sm:$0xff]
  %v394 = vld [vmem:[%s9 + $0x78] sm:$0xff]
  %v395 = vld [vmem:[%s10] sm:$0x1]
  %v397 = vlaneseq
  %v398 = vshrl.u32 %v397, 7
  %v399 = vsub.s32 0, %v398
  %v400 = vrot.slane %v395, %v399
  %402 = vmatprep.subr.mxu0 0.0
  %403 = vmatpush1.msra.mxu0 %v379
  %404 = vmatprep.subr.mxu0 0.0
  %405 = vmatpush1.msra.mxu0 %v380
  %406 = vmatprep.subr.mxu0 0.0
  %407 = vmatpush1.msra.mxu0 %v381
  %408 = vmatprep.subr.mxu0 0.0
  %409 = vmatpush1.msra.mxu0 %v382
  %410 = vmatprep.subr.mxu0 0.0
  %411 = vmatpush1.msra.mxu0 %v383
  %412 = vmatprep.subr.mxu0 0.0
  %413 = vmatpush1.msra.mxu0 %v384
  %414 = vmatprep.subr.mxu0 0.0
  %415 = vmatpush1.msra.mxu0 %v385
  %416 = vmatprep.subr.mxu0 0.0
  %417 = vmatpush1.msra.mxu0 %v386
  %418 = vmatprep.subr.mxu0 0.0
  %419 = vmatpush1.msra.mxu0 %v387
  %420 = vmatprep.subr.mxu0 0.0
  %421 = vmatpush1.msra.mxu0 %v388
  %422 = vmatprep.subr.mxu0 0.0
  %423 = vmatpush1.msra.mxu0 %v389
  %424 = vmatprep.subr.mxu0 0.0
  %425 = vmatpush1.msra.mxu0 %v390
  %426 = vmatprep.subr.mxu0 0.0
  %427 = vmatpush1.msra.mxu0 %v391
  %428 = vmatprep.subr.mxu0 0.0
  %429 = vmatpush1.msra.mxu0 %v392
  %430 = vmatprep.subr.mxu0 0.0
  %431 = vmatpush1.msra.mxu0 %v393
  %432 = vmatprep.subr.mxu0 0.0
  %433 = vmatpush1.msra.mxu0 %v394
  %434 = vmatprep.subr.mxu0 0.0
  %435 = vmatpush1.msra.mxu0 0.0
  %436 = vmatprep.subr.mxu0 0.0
  %437 = vmatpush1.msra.mxu0 0.0
  %438 = vmatprep.subr.mxu0 0.0
  %439 = vmatpush1.msra.mxu0 0.0
  %440 = vmatprep.subr.mxu0 0.0
  %441 = vmatpush1.msra.mxu0 0.0
  %442 = vmatprep.subr.mxu0 0.0
  %443 = vmatpush1.msra.mxu0 0.0
  %444 = vmatprep.subr.mxu0 0.0
  %445 = vmatpush1.msra.mxu0 0.0
  %446 = vmatprep.subr.mxu0 0.0
  %447 = vmatpush1.msra.mxu0 0.0
  %448 = vmatprep.subr.mxu0 0.0
  %449 = vmatpush1.msra.mxu0 0.0
  %450 = vmatprep.subr.mxu0 0.0
  %451 = vmatpush1.msra.mxu0 0.0
  %452 = vmatprep.subr.mxu0 0.0
  %453 = vmatpush1.msra.mxu0 0.0
  %454 = vmatprep.subr.mxu0 0.0
  %455 = vmatpush1.msra.mxu0 0.0
  %456 = vmatprep.subr.mxu0 0.0
  %457 = vmatpush1.msra.mxu0 0.0
  %458 = vmatprep.subr.mxu0 0.0
  %459 = vmatpush1.msra.mxu0 0.0
  %460 = vmatprep.subr.mxu0 0.0
  %461 = vmatpush1.msra.mxu0 0.0
  %462 = vmatprep.subr.mxu0 0.0
  %463 = vmatpush1.msra.mxu0 0.0
  %464 = vmatprep.subr.mxu0 0.0
  %465 = vmatpush1.msra.mxu0 0.0
  %466 = vmatprep.mubr.f32.mxu0 0.0
  %467 = vmatmul.mubr.f32.gmra.mrb[0].mxu0 %v378
  %v468 = vpop.f32.mrb[0].mxu0
  %v469 = vadd.f32 %v400, %v468
  %v470 = vpop.f32.mrb[0].mxu0
  %471 = vdwg.mxu0
  %v472 = vand.u32 2147483647, %v469
  %vm473 = vcmask 48128
  %v474 = vsel %vm473, %v297, -inf
  %475 = vmax.xlane.f32.xlu0 %v474
  %v476 = vpop.xlane.xlu0 %475
  %v477 = vmul.f32 %v476, %v472
  %vm478 = vcmask 97328
  %v479 = vsel %vm478, %v297, -inf
  %480 = vmax.xlane.f32.xlu0 %v479
  %v481 = vpop.xlane.xlu0 %480
  %v482 = vmul.f32 %v481, %v472
  %484 = vrot.lane.b32.xlu0 %v482, 96
  %v485 = vpop.permute.xlu0 %484
  %v487 = vadd.f32 %v477, %v485
  %489 = vrot.lane.b32.xlu0 %v375, 32
  %v490 = vpop.permute.xlu0 %489
  %v492 = vadd.f32 %v487, %v490
  %v493 = vmul.f32 %v492, 0.5
  %v494 = vtanh.pop %v493
  %vm495 = vcmp.gt.f32.partialorder %v492, 0.0
  %v496 = vmul.f32 %v494, 2.0
  %v497 = vsub.f32 1.0, %v494
  %v498 = vrcp.pop %v497
  %v499 = vmul.f32 %v496, %v498
  %v500 = vsel %vm495, %v492, %v499
  %502 = vrot.lane.b32.xlu0 %v472, 64
  %v503 = vpop.permute.xlu0 %502
  %v505 = vmul.f32 %v500, %v503
  %vm506 = vcmask 261120
  %v507 = vsel %vm506, %v505, 0.0
  %508 = vadd.xlane.f32.xlu0 %v507
  %v509 = vpop.xlane.xlu0 %508
  %v510 = vadd.f32 %v509, %v469
  %512 = vrot.lane.b32.xlu0 %v510, 32
  %v513 = vpop.permute.xlu0 %512
  %vm515 = vcmask 7168
  %516 = vst.msk [vmem:[%s11] sm:$0xff] %vm515, %v513
  // Predicated region
  $region46: #{tpu_custom_call.1} parent=0 // pred_check
    _
  $region47: #{tpu_custom_call.1} parent=0 // pred_check_branch
    %518 = sbr.rel (0) target = $region49
  $region48: #{tpu_custom_call.1} parent=0 // pred_region
    _
  $region49: #{tpu_custom_call.1} parent=0 // pred_fallthru
    _
  // Predicated region
  $region50: #{tpu_custom_call.1} parent=0 // pred_check
    _
  $region51: #{tpu_custom_call.1} parent=0 // pred_check_branch
    %520 = sbr.rel (0) target = $region53
  $region52: #{tpu_custom_call.1} parent=0 // pred_region
    _
  $region53: #{tpu_custom_call.1} parent=0 // pred_fallthru
    _

</llo_original>
